<compile_context>
chip_gen: v5e
topology: v5e:2x2
jax: 0.10.0
libtpu: 0.0.40
codegen_flags: <defaults>
</compile_context>

<pallas_src>
import functools

import jax
import jax.numpy as jnp
from jax.experimental import pallas as pl
from jax.experimental.pallas import tpu as pltpu


def _round_up(n, m):
    return ((n + m - 1) // m) * m


def _default_compute_dtype():
    """bf16 on v6e/v7x (bf16 VPU/EUP/MXU), f32 on v5e / unknown."""
    try:
        kind = jax.devices()[0].device_kind.lower()
    except Exception:  # pragma: no cover - defensive, e.g. no devices yet
        return jnp.float32
    for tag in ("v6", "v7", "trillium"):
        if tag in kind:
            return jnp.bfloat16
    return jnp.float32


def _mlp_kernel(depth, n_chunks, chunk, compute_dtype, *refs):
    """One big batch tile of the MLP, processed in 512-lane sub-chunks.

    Refs (feature-major / transposed layout):
      x_ref    : (2, TB)           input, batch in lanes (lane-dense DMA)
      win_ref  : (W, 2)  f32       input-layer weight, (out, in)
      bin_ref  : (W, 1)  f32
      wh_ref   : (L, W, W) cdtype  hidden weights (pre-cast on host), depth>=2 only
      bh_ref   : (L, W, 1) cdtype  hidden biases  (pre-cast on host), depth>=2 only
      wout_ref : (W, 1)  f32
      bout_ref : (1, 1)  f32
      o_ref    : (1, TB) f32       lane-dense output tile
    """
    if depth >= 2:
        (x_ref, win_ref, bin_ref, wh_ref, bh_ref,
         wout_ref, bout_ref, o_ref) = refs
    else:
        x_ref, win_ref, bin_ref, wout_ref, bout_ref, o_ref = refs
        wh_ref = bh_ref = None

    # Hoist all (tiny) weight loads out of the chunk loop: no per-chunk reloads,
    # no per-chunk broadcasts/casts of weights (they are already compute_dtype).
    w0 = win_ref[:, 0:1]                      # (W, 1) f32
    w1 = win_ref[:, 1:2]                      # (W, 1) f32
    b_in = bin_ref[...]                       # (W, 1) f32
    w_out = wout_ref[...]                     # (W, 1) f32
    b_out = bout_ref[...]                     # (1, 1) f32
    whs = [wh_ref[l] for l in range(depth - 1)] if depth >= 2 else []
    bhs = [bh_ref[l] for l in range(depth - 1)] if depth >= 2 else []

    # Statically-unrolled inner loop over lane-aligned sub-chunks: amortizes the
    # per-grid-step fixed cost while keeping each h at <= (W, chunk) vregs.
    for c in range(n_chunks):
        off = c * chunk                       # static, multiple of 128

        # Input layer: K=2 contraction -> two VPU broadcast FMAs + tanh.
        x0 = x_ref[0:1, off:off + chunk]      # (1, chunk)
        x1 = x_ref[1:2, off:off + chunk]      # (1, chunk)
        h = jnp.tanh(w0 * x0 + w1 * x1 + b_in)          # (W, chunk) f32
        h = h.astype(compute_dtype)

        # Hidden layers: MXU matmuls (f32 accumulate), bias+tanh in compute_dtype.
        for layer in range(depth - 1):
            acc = jnp.dot(whs[layer], h, preferred_element_type=jnp.float32)
            h = jnp.tanh(acc.astype(compute_dtype) + bhs[layer])

        # Output layer: N=1 -> VPU multiply + sublane reduction; lane-dense store.
        hf = h.astype(jnp.float32)
        o_ref[:, off:off + chunk] = (
            jnp.sum(w_out * hf, axis=0, keepdims=True) + b_out)


def mlp_forward(x, params, depth, *, tile_b=4096, chunk=512, compute_dtype=None):
    """Pallas MLP forward.  x: (B, 2) float32 -> (B, 1) float32.

    compute_dtype=None auto-selects (bf16 on v6e/v7x, f32 on v5e).  Wrap this
    function in jax.jit so the transpose/pad/output-slice re-layout fuses with
    the surrounding graph instead of materializing extra HBM passes.
    """
    if compute_dtype is None:
        compute_dtype = _default_compute_dtype()

    win, bin_, wh, bh, wout, bout = params
    W = win.shape[1]
    B = x.shape[0]

    # ---- one-off re-layout into kernel-friendly shapes ----------------------
    x_t = x.T.astype(jnp.float32)                          # (2, B), batch -> lanes
    win_t = win.astype(jnp.float32).T                      # (W, 2)  (out, in)
    bin_t = bin_.astype(jnp.float32).reshape(W, 1)         # (W, 1)
    wout_f = wout.astype(jnp.float32)                      # (W, 1)
    bout_t = bout.astype(jnp.float32).reshape(1, 1)        # (1, 1)
    if depth >= 2:
        # Hidden weights/biases pre-cast to compute_dtype on the host (no
        # per-layer astype inside the kernel, half the DMA/VMEM in bf16 mode).
        wh_t = jnp.swapaxes(wh, 1, 2).astype(compute_dtype)   # (L, W, W) (out, in)
        bh_t = jnp.swapaxes(bh, 1, 2).astype(compute_dtype)   # (L, W, 1)

    # ---- batch tiling: big lane-dense tiles + 128-aligned inner chunks ------
    chunk = min(chunk, _round_up(B, 128))
    chunk = _round_up(chunk, 128)
    tb = max(chunk, _round_up(min(tile_b, _round_up(B, chunk)), chunk))
    if B > 2 * chunk:
        # Ensure >= 2 grid steps so "parallel" can shard across v7x's two TCs.
        half = _round_up((B + 1) // 2, chunk)
        tb = min(tb, half)
    b_pad = _round_up(B, tb)
    if b_pad != B:
        x_t = jnp.pad(x_t, ((0, 0), (0, b_pad - B)))
    grid = (b_pad // tb,)
    n_chunks = tb // chunk

    def const(a):  # weight blocks: full array, block index never changes
        return pl.BlockSpec(a.shape, lambda i, _nd=a.ndim: (0,) * _nd)

    in_specs = [pl.BlockSpec((2, tb), lambda i: (0, i)),   # x tile (lane-dense)
                const(win_t), const(bin_t)]
    args = [x_t, win_t, bin_t]
    if depth >= 2:
        in_specs += [const(wh_t), const(bh_t)]
        args += [wh_t, bh_t]
    in_specs += [const(wout_f), const(bout_t)]
    args += [wout_f, bout_t]

    out = pl.pallas_call(
        functools.partial(_mlp_kernel, depth, n_chunks, chunk, compute_dtype),
        out_shape=jax.ShapeDtypeStruct((1, b_pad), jnp.float32),
        grid=grid,
        in_specs=in_specs,
        out_specs=pl.BlockSpec((1, tb), lambda i: (0, i)),  # lane-dense output
        compiler_params=pltpu.CompilerParams(
            dimension_semantics=("parallel",),              # batch across TCs
        ),
    )(*args)

    return out[0, :B].reshape(B, 1)


def init_params(key, width, depth):
    """Deterministic parameter init (shapes from Net.__init__); weights stored
    as (in, out) so the math is x @ W + b (== PyTorch x @ W_torch.T + b)."""
    ks = jax.random.split(key, 6)
    n_hidden = max(depth - 1, 1)
    win = jax.random.normal(ks[0], (2, width), jnp.float32) * 0.5
    bin_ = jax.random.normal(ks[1], (1, width), jnp.float32) * 0.1
    wh = jax.random.normal(ks[2], (n_hidden, width, width), jnp.float32) * 0.2
    bh = jax.random.normal(ks[3], (n_hidden, 1, width), jnp.float32) * 0.1
    wout = jax.random.normal(ks[4], (width, 1), jnp.float32) * 0.5
    bout = jax.random.normal(ks[5], (1, 1), jnp.float32) * 0.1
    return win, bin_, wh, bh, wout, bout


def mlp_reference(x, params, depth):
    """Pure-JAX reference of the PyTorch forward pass."""
    win, bin_, wh, bh, wout, bout = params
    h = jnp.tanh(x @ win + bin_)
    for layer in range(depth - 1):
        h = jnp.tanh(h @ wh[layer] + bh[layer])
    return h @ wout + bout


if __name__ == "__main__":
    width, depth = 32, 3

    key = jax.random.PRNGKey(0)
    kx, kp, kx2 = jax.random.split(key, 3)
    params = init_params(kp, width, depth)

    # f32 compute path: bit-for-bit comparable to the pure-JAX reference.
    fwd_f32 = jax.jit(functools.partial(mlp_forward, depth=depth,
                                        compute_dtype=jnp.float32))

    # Small shape consistent with the module's forward (input features = 2).
    batch = 8
    x = jax.random.normal(kx, (batch, 2), jnp.float32)
    out = jax.block_until_ready(fwd_f32(x, params))
    ref = mlp_reference(x, params, depth)
    assert out.shape == (batch, 1)
    assert jnp.allclose(out, ref, atol=2e-5, rtol=1e-4), (out, ref)

    # Multi-tile grid + last-tile padding + chunked inner loop (f32, strict).
    batch2 = 3000
    x2 = jax.random.normal(kx2, (batch2, 2), jnp.float32)
    fwd_f32_tiled = jax.jit(functools.partial(mlp_forward, depth=depth,
                                              tile_b=1024, chunk=256,
                                              compute_dtype=jnp.float32))
    out2 = jax.block_until_ready(fwd_f32_tiled(x2, params))
    ref2 = mlp_reference(x2, params, depth)
    assert out2.shape == (batch2, 1)
    assert jnp.allclose(out2, ref2, atol=2e-5, rtol=1e-4)

    # Auto compute dtype (bf16 on v6e/v7x, f32 on v5e): loose-tolerance check.
    fwd_auto = jax.jit(functools.partial(mlp_forward, depth=depth))
    out3 = jax.block_until_ready(fwd_auto(x2, params))
    assert out3.shape == (batch2, 1)
    assert bool(jnp.max(jnp.abs(out3 - ref2)) < 0.15)

    print("KERNEL_OK")
</pallas_src>

<mosaic_0001>
module attributes {stable_mosaic.version = 11 : i64} {
  func.func @_mlp_kernel(%arg0: i32, %arg1: memref<2x128xf32, #tpu.memory_space<vmem>>, %arg2: memref<32x2xf32, #tpu.memory_space<vmem>>, %arg3: memref<32x1xf32, #tpu.memory_space<vmem>>, %arg4: memref<2x32x32xf32, #tpu.memory_space<vmem>>, %arg5: memref<2x32x1xf32, #tpu.memory_space<vmem>>, %arg6: memref<32x1xf32, #tpu.memory_space<vmem>>, %arg7: memref<1x1xf32, #tpu.memory_space<vmem>>, %arg8: memref<1x128xf32, #tpu.memory_space<vmem>>) attributes {dimension_semantics = [#tpu.dimension_semantics<parallel>], iteration_bounds = array<i64: 1>, scalar_prefetch = 0 : i64, scratch_operands = 0 : i64, tpu.core_type = #tpu.core_type<tc>, window_params = [{transform_indices = @transform_0, window_bounds = array<i64: 2, 128>}, {pipeline_mode = #tpu.pipeline_mode<synchronous>, transform_indices = @transform_1, window_bounds = array<i64: 32, 2>}, {pipeline_mode = #tpu.pipeline_mode<synchronous>, transform_indices = @transform_2, window_bounds = array<i64: 32, 1>}, {pipeline_mode = #tpu.pipeline_mode<synchronous>, transform_indices = @transform_3, window_bounds = array<i64: 2, 32, 32>}, {pipeline_mode = #tpu.pipeline_mode<synchronous>, transform_indices = @transform_4, window_bounds = array<i64: 2, 32, 1>}, {pipeline_mode = #tpu.pipeline_mode<synchronous>, transform_indices = @transform_5, window_bounds = array<i64: 32, 1>}, {pipeline_mode = #tpu.pipeline_mode<synchronous>, transform_indices = @transform_6, window_bounds = array<i64: 1, 1>}, {transform_indices = @transform_7, window_bounds = array<i64: 1, 128>}]} {
    %c0 = arith.constant 0 : index
    %c0_0 = arith.constant 0 : index
    %0 = vector.load %arg2[%c0, %c0_0] : memref<32x2xf32, #tpu.memory_space<vmem>>, vector<32x1xf32>
    %c0_1 = arith.constant 0 : index
    %c1 = arith.constant 1 : index
    %1 = vector.load %arg2[%c0_1, %c1] : memref<32x2xf32, #tpu.memory_space<vmem>>, vector<32x1xf32>
    %c0_2 = arith.constant 0 : index
    %c0_3 = arith.constant 0 : index
    %2 = vector.load %arg3[%c0_2, %c0_3] : memref<32x1xf32, #tpu.memory_space<vmem>>, vector<32x1xf32>
    %c0_4 = arith.constant 0 : index
    %c0_5 = arith.constant 0 : index
    %3 = vector.load %arg6[%c0_4, %c0_5] : memref<32x1xf32, #tpu.memory_space<vmem>>, vector<32x1xf32>
    %c0_6 = arith.constant 0 : index
    %c0_7 = arith.constant 0 : index
    %4 = vector.load %arg7[%c0_6, %c0_7] : memref<1x1xf32, #tpu.memory_space<vmem>>, vector<1x1xf32>
    %c0_8 = arith.constant 0 : index
    %c0_9 = arith.constant 0 : index
    %c0_10 = arith.constant 0 : index
    %5 = vector.load %arg4[%c0_8, %c0_9, %c0_10] : memref<2x32x32xf32, #tpu.memory_space<vmem>>, vector<1x32x32xf32>
    %6 = vector.shape_cast %5 : vector<1x32x32xf32> to vector<32x32xf32>
    %c1_11 = arith.constant 1 : index
    %c0_12 = arith.constant 0 : index
    %c0_13 = arith.constant 0 : index
    %7 = vector.load %arg4[%c1_11, %c0_12, %c0_13] : memref<2x32x32xf32, #tpu.memory_space<vmem>>, vector<1x32x32xf32>
    %8 = vector.shape_cast %7 : vector<1x32x32xf32> to vector<32x32xf32>
    %c0_14 = arith.constant 0 : index
    %c0_15 = arith.constant 0 : index
    %c0_16 = arith.constant 0 : index
    %9 = vector.load %arg5[%c0_14, %c0_15, %c0_16] : memref<2x32x1xf32, #tpu.memory_space<vmem>>, vector<1x32x1xf32>
    %10 = vector.shape_cast %9 : vector<1x32x1xf32> to vector<32x1xf32>
    %c1_17 = arith.constant 1 : index
    %c0_18 = arith.constant 0 : index
    %c0_19 = arith.constant 0 : index
    %11 = vector.load %arg5[%c1_17, %c0_18, %c0_19] : memref<2x32x1xf32, #tpu.memory_space<vmem>>, vector<1x32x1xf32>
    %12 = vector.shape_cast %11 : vector<1x32x1xf32> to vector<32x1xf32>
    %c0_20 = arith.constant 0 : index
    %c0_21 = arith.constant 0 : index
    %13 = vector.load %arg1[%c0_20, %c0_21] : memref<2x128xf32, #tpu.memory_space<vmem>>, vector<1x128xf32>
    %c1_22 = arith.constant 1 : index
    %c0_23 = arith.constant 0 : index
    %14 = vector.load %arg1[%c1_22, %c0_23] : memref<2x128xf32, #tpu.memory_space<vmem>>, vector<1x128xf32>
    %15 = vector.broadcast %0 : vector<32x1xf32> to vector<32x128xf32>
    %16 = vector.broadcast %13 : vector<1x128xf32> to vector<32x128xf32>
    %17 = arith.mulf %15, %16 : vector<32x128xf32>
    %18 = vector.broadcast %1 : vector<32x1xf32> to vector<32x128xf32>
    %19 = vector.broadcast %14 : vector<1x128xf32> to vector<32x128xf32>
    %20 = arith.mulf %18, %19 : vector<32x128xf32>
    %21 = arith.addf %17, %20 : vector<32x128xf32>
    %22 = vector.broadcast %2 : vector<32x1xf32> to vector<32x128xf32>
    %23 = arith.addf %21, %22 : vector<32x128xf32>
    %24 = math.tanh %23 : vector<32x128xf32>
    %cst = arith.constant dense<0.000000e+00> : vector<32x128xf32>
    %25 = tpu.matmul %6, %24, %cst {dimension_numbers = #tpu.dot_dimension_numbers<[1], [0], [0], [1], [0, 0, 1, 1], [], []>} : vector<32x32xf32>, vector<32x128xf32>, vector<32x128xf32> -> vector<32x128xf32>
    %26 = vector.broadcast %10 : vector<32x1xf32> to vector<32x128xf32>
    %27 = arith.addf %25, %26 : vector<32x128xf32>
    %28 = math.tanh %27 : vector<32x128xf32>
    %cst_24 = arith.constant dense<0.000000e+00> : vector<32x128xf32>
    %29 = tpu.matmul %8, %28, %cst_24 {dimension_numbers = #tpu.dot_dimension_numbers<[1], [0], [0], [1], [0, 0, 1, 1], [], []>} : vector<32x32xf32>, vector<32x128xf32>, vector<32x128xf32> -> vector<32x128xf32>
    %30 = vector.broadcast %12 : vector<32x1xf32> to vector<32x128xf32>
    %31 = arith.addf %29, %30 : vector<32x128xf32>
    %32 = math.tanh %31 : vector<32x128xf32>
    %33 = vector.broadcast %3 : vector<32x1xf32> to vector<32x128xf32>
    %34 = arith.mulf %33, %32 : vector<32x128xf32>
    %cst_25 = arith.constant dense<0.000000e+00> : vector<128xf32>
    %35 = vector.multi_reduction <add>, %34, %cst_25 [0] : vector<32x128xf32> to vector<128xf32>
    %36 = vector.shape_cast %35 : vector<128xf32> to vector<1x128xf32>
    %37 = vector.broadcast %4 : vector<1x1xf32> to vector<1x128xf32>
    %38 = arith.addf %36, %37 : vector<1x128xf32>
    %c0_26 = arith.constant 0 : index
    %c0_27 = arith.constant 0 : index
    %39 = vector.load %arg8[%c0_26, %c0_27] : memref<1x128xf32, #tpu.memory_space<vmem>>, vector<1x128xf32>
    tpu.vector_store %arg8[%c0_26, %c0_27], %38 {strides = array<i32>} : memref<1x128xf32, #tpu.memory_space<vmem>>, vector<1x128xf32>,
    return
  }
  func.func @transform_0(%arg0: i32) -> (i32, i32) {
    %c0_i32 = arith.constant 0 : i32
    %c0_i32_0 = arith.constant 0 : i32
    return %c0_i32, %arg0 : i32, i32
  }
  func.func @transform_1(%arg0: i32) -> (i32, i32) {
    %c0_i32 = arith.constant 0 : i32
    %c0_i32_0 = arith.constant 0 : i32
    %c0_i32_1 = arith.constant 0 : i32
    return %c0_i32, %c0_i32_0 : i32, i32
  }
  func.func @transform_2(%arg0: i32) -> (i32, i32) {
    %c0_i32 = arith.constant 0 : i32
    %c0_i32_0 = arith.constant 0 : i32
    %c0_i32_1 = arith.constant 0 : i32
    return %c0_i32, %c0_i32_0 : i32, i32
  }
  func.func @transform_3(%arg0: i32) -> (i32, i32, i32) {
    %c0_i32 = arith.constant 0 : i32
    %c0_i32_0 = arith.constant 0 : i32
    %c0_i32_1 = arith.constant 0 : i32
    %c0_i32_2 = arith.constant 0 : i32
    return %c0_i32, %c0_i32_0, %c0_i32_1 : i32, i32, i32
  }
  func.func @transform_4(%arg0: i32) -> (i32, i32, i32) {
    %c0_i32 = arith.constant 0 : i32
    %c0_i32_0 = arith.constant 0 : i32
    %c0_i32_1 = arith.constant 0 : i32
    %c0_i32_2 = arith.constant 0 : i32
    return %c0_i32, %c0_i32_0, %c0_i32_1 : i32, i32, i32
  }
  func.func @transform_5(%arg0: i32) -> (i32, i32) {
    %c0_i32 = arith.constant 0 : i32
    %c0_i32_0 = arith.constant 0 : i32
    %c0_i32_1 = arith.constant 0 : i32
    return %c0_i32, %c0_i32_0 : i32, i32
  }
  func.func @transform_6(%arg0: i32) -> (i32, i32) {
    %c0_i32 = arith.constant 0 : i32
    %c0_i32_0 = arith.constant 0 : i32
    %c0_i32_1 = arith.constant 0 : i32
    return %c0_i32, %c0_i32_0 : i32, i32
  }
  func.func @transform_7(%arg0: i32) -> (i32, i32) {
    %c0_i32 = arith.constant 0 : i32
    %c0_i32_0 = arith.constant 0 : i32
    return %c0_i32, %arg0 : i32, i32
  }
}

</mosaic_0001>

<llo_original>
// kernel: mlp_forward.1
$region0: #{mlp_forward.1}
  #allocation0 [shape = 'u32[]', space=smem, size = 0x4, offset = 0x4, fixed_abs, tag = 'smem constant byte address 0x4 - core index']
  #allocation1 [shape = 'u32[72,128]{1,0:T(1,128)}', space=vmem, size = 0x9000, scoped, tag = 'internal scratch']
  #allocation2 [shape = 'f32[1,1]{1,0:T(1,128)S(1)}', space=vmem, size = 0x200, scoped, tag = 'scoped memory for mlp_forward.1']
  %s0 = inlined_call_operand.vmem [shape: f32[2,128], index: 0, kind: input, shape index: {}]
  %s1 = inlined_call_operand.vmem [shape: f32[32,2], index: 1, kind: input, shape index: {}]
  %s2 = inlined_call_operand.vmem [shape: f32[32,1], index: 2, kind: input, shape index: {}]
  %s3 = inlined_call_operand.vmem [shape: f32[2,32,32], index: 3, kind: input, shape index: {}]
  %s4 = inlined_call_operand.vmem [shape: f32[2,32,1], index: 4, kind: input, shape index: {}]
  %s5 = inlined_call_operand.vmem [shape: f32[32,1], index: 5, kind: input, shape index: {}]
  %s6 = inlined_call_operand.<no memory space> [shape: f32[1,1], index: 6, kind: input, shape index: {}]
  %s7 = inlined_call_operand.vmem [shape: f32[1,128], index: 7, kind: output, shape index: {}]
  %s8 = sld [smem:[#allocation0]]
  $region38: #{mlp_forward.1} parent=0
    _
  %s10 = ssub.s32 1, %s8
  %s11 = scalar_select 0, %s10, %s8
  %v12 = vstv %s6
  %13 = vst [vmem:[#allocation2] sm:$0x1] %v12
  // Predicated region
  $region2: #{mlp_forward.1} parent=0 // pred_check
    _
  $region3: #{mlp_forward.1} parent=0 // pred_check_branch
    %15 = sbr.rel (0) target = $region5
  $region4: #{mlp_forward.1} parent=0 // pred_region
    _
  $region5: #{mlp_forward.1} parent=0 // pred_fallthru
    _
  // Predicated region
  $region6: #{mlp_forward.1} parent=0 // pred_check
    _
  $region7: #{mlp_forward.1} parent=0 // pred_check_branch
    %17 = sbr.rel (0) target = $region9
  $region8: #{mlp_forward.1} parent=0 // pred_region
    _
  $region9: #{mlp_forward.1} parent=0 // pred_fallthru
    _
  // Predicated region
  $region10: #{mlp_forward.1} parent=0 // pred_check
    _
  $region11: #{mlp_forward.1} parent=0 // pred_check_branch
    %19 = sbr.rel (0) target = $region13
  $region12: #{mlp_forward.1} parent=0 // pred_region
    _
  $region13: #{mlp_forward.1} parent=0 // pred_fallthru
    _
  // Predicated region
  $region14: #{mlp_forward.1} parent=0 // pred_check
    _
  $region15: #{mlp_forward.1} parent=0 // pred_check_branch
    %21 = sbr.rel (0) target = $region17
  $region16: #{mlp_forward.1} parent=0 // pred_region
    _
  $region17: #{mlp_forward.1} parent=0 // pred_fallthru
    _
  // Predicated region
  $region18: #{mlp_forward.1} parent=0 // pred_check
    _
  $region19: #{mlp_forward.1} parent=0 // pred_check_branch
    %23 = sbr.rel (0) target = $region21
  $region20: #{mlp_forward.1} parent=0 // pred_region
    _
  $region21: #{mlp_forward.1} parent=0 // pred_fallthru
    _
  // Predicated region
  $region22: #{mlp_forward.1} parent=0 // pred_check
    _
  $region23: #{mlp_forward.1} parent=0 // pred_check_branch
    %25 = sbr.rel (0) target = $region25
  $region24: #{mlp_forward.1} parent=0 // pred_region
    _
  $region25: #{mlp_forward.1} parent=0 // pred_fallthru
    _
  // Predicated region
  $region26: #{mlp_forward.1} parent=0 // pred_check
    _
  $region27: #{mlp_forward.1} parent=0 // pred_check_branch
    %27 = sbr.rel (0) target = $region29
  $region28: #{mlp_forward.1} parent=0 // pred_region
    _
  $region29: #{mlp_forward.1} parent=0 // pred_fallthru
    _
  %v28 = vld [vmem:[%s1] sm:$0xff]
  %v29 = vld [vmem:[%s1 + $0x8] sm:$0xff]
  %v30 = vld [vmem:[%s1 + $0x10] sm:$0xff]
  %v31 = vld [vmem:[%s1 + $0x18] sm:$0xff]
  %v32 = vld [vmem:[%s2] sm:$0xff]
  %v33 = vld [vmem:[%s2 + $0x8] sm:$0xff]
  %v34 = vld [vmem:[%s2 + $0x10] sm:$0xff]
  %v35 = vld [vmem:[%s2 + $0x18] sm:$0xff]
  %v36 = vld [vmem:[%s5] sm:$0xff]
  %v37 = vld [vmem:[%s5 + $0x8] sm:$0xff]
  %v38 = vld [vmem:[%s5 + $0x10] sm:$0xff]
  %v39 = vld [vmem:[%s5 + $0x18] sm:$0xff]
  %v40 = vld [vmem:[#allocation2] sm:$0x1]
  %v41 = vld [vmem:[%s3] sm:$0xff]
  %v42 = vld [vmem:[%s3 + $0x8] sm:$0xff]
  %v43 = vld [vmem:[%s3 + $0x10] sm:$0xff]
  %v44 = vld [vmem:[%s3 + $0x18] sm:$0xff]
  %s45 = scalar_lea.vmem %s3, 32
  %v46 = vld [vmem:[%s45] sm:$0xff]
  %v47 = vld [vmem:[%s45 + $0x8] sm:$0xff]
  %v48 = vld [vmem:[%s45 + $0x10] sm:$0xff]
  %v49 = vld [vmem:[%s45 + $0x18] sm:$0xff]
  %v50 = vld [vmem:[%s4] sm:$0xff]
  %v51 = vld [vmem:[%s4 + $0x8] sm:$0xff]
  %v52 = vld [vmem:[%s4 + $0x10] sm:$0xff]
  %v53 = vld [vmem:[%s4 + $0x18] sm:$0xff]
  %s54 = scalar_lea.vmem %s4, 32
  %v55 = vld [vmem:[%s54] sm:$0xff]
  %v56 = vld [vmem:[%s54 + $0x8] sm:$0xff]
  %v57 = vld [vmem:[%s54 + $0x10] sm:$0xff]
  %v58 = vld [vmem:[%s54 + $0x18] sm:$0xff]
  %v59 = vld [vmem:[%s0] sm:$0x1]
  %v60 = vld [vmem:[%s0 + $0x1] sm:$0x1]
  %62 = vset.pattern.permute.xlu0 0
  %63 = vperm.xlu0 %62, %v28
  %v64 = vpop.permute.xlu0 %63
  %67 = vset.pattern.permute.xlu0 0
  %68 = vperm.xlu0 %67, %v29
  %v69 = vpop.permute.xlu0 %68
  %72 = vset.pattern.permute.xlu0 0
  %73 = vperm.xlu0 %72, %v30
  %v74 = vpop.permute.xlu0 %73
  %77 = vset.pattern.permute.xlu0 0
  %78 = vperm.xlu0 %77, %v31
  %v79 = vpop.permute.xlu0 %78
  %v81 = vperm.slane %v59, 0
  %v82 = vmul.f32 %v64, %v81
  %v83 = vmul.f32 %v69, %v81
  %v84 = vmul.f32 %v74, %v81
  %v85 = vmul.f32 %v79, %v81
  %86 = vset.pattern.permute.xlu0 1
  %87 = vperm.xlu0 %86, %v28
  %v88 = vpop.permute.xlu0 %87
  %90 = vset.pattern.permute.xlu0 1
  %91 = vperm.xlu0 %90, %v29
  %v92 = vpop.permute.xlu0 %91
  %94 = vset.pattern.permute.xlu0 1
  %95 = vperm.xlu0 %94, %v30
  %v96 = vpop.permute.xlu0 %95
  %98 = vset.pattern.permute.xlu0 1
  %99 = vperm.xlu0 %98, %v31
  %v100 = vpop.permute.xlu0 %99
  %v102 = vperm.slane %v60, 0
  %v103 = vmul.f32 %v88, %v102
  %v104 = vmul.f32 %v92, %v102
  %v105 = vmul.f32 %v96, %v102
  %v106 = vmul.f32 %v100, %v102
  %v107 = vadd.f32 %v82, %v103
  %v108 = vadd.f32 %v83, %v104
  %v109 = vadd.f32 %v84, %v105
  %v110 = vadd.f32 %v85, %v106
  %112 = vset.pattern.permute.xlu0 0
  %113 = vperm.xlu0 %112, %v32
  %v114 = vpop.permute.xlu0 %113
  %117 = vset.pattern.permute.xlu0 0
  %118 = vperm.xlu0 %117, %v33
  %v119 = vpop.permute.xlu0 %118
  %122 = vset.pattern.permute.xlu0 0
  %123 = vperm.xlu0 %122, %v34
  %v124 = vpop.permute.xlu0 %123
  %127 = vset.pattern.permute.xlu0 0
  %128 = vperm.xlu0 %127, %v35
  %v129 = vpop.permute.xlu0 %128
  %v131 = vadd.f32 %v107, %v114
  %v132 = vadd.f32 %v108, %v119
  %v133 = vadd.f32 %v109, %v124
  %v134 = vadd.f32 %v110, %v129
  %v135 = vtanh.pop %v131
  %v136 = vtanh.pop %v132
  %v137 = vtanh.pop %v133
  %v138 = vtanh.pop %v134
  %140 = vset.pattern.permute.xlu0 0
  %141 = vperm.xlu0 %140, %v50
  %v142 = vpop.permute.xlu0 %141
  %145 = vset.pattern.permute.xlu0 0
  %146 = vperm.xlu0 %145, %v51
  %v147 = vpop.permute.xlu0 %146
  %150 = vset.pattern.permute.xlu0 0
  %151 = vperm.xlu0 %150, %v52
  %v152 = vpop.permute.xlu0 %151
  %155 = vset.pattern.permute.xlu0 0
  %156 = vperm.xlu0 %155, %v53
  %v157 = vpop.permute.xlu0 %156
  %vm159 = vcmask 261120
  %v161 = vsel %vm159, %v41, 0
  %v164 = vsel %vm159, %v42, 0
  %v167 = vsel %vm159, %v43, 0
  %v170 = vsel %vm159, %v44, 0
  %172 = vmatpush.msra.mxu0 0.0
  %173 = vmatpush.msra.mxu0 0.0
  %174 = vmatpush.msra.mxu0 0.0
  %175 = vmatpush.msra.mxu0 0.0
  %176 = vmatpush.msra.mxu0 0.0
  %177 = vmatpush.msra.mxu0 0.0
  %178 = vmatpush.msra.mxu0 0.0
  %179 = vmatpush.msra.mxu0 0.0
  %180 = vmatpush.msra.mxu0 0.0
  %181 = vmatpush.msra.mxu0 0.0
  %182 = vmatpush.msra.mxu0 0.0
  %183 = vmatpush.msra.mxu0 0.0
  %184 = vmatpush.msra.mxu0 %v138
  %185 = vmatpush.msra.mxu0 %v137
  %186 = vmatpush.msra.mxu0 %v136
  %187 = vmatpush.msra.mxu0 %v135
  %188 = vmatmul.f32.gmra.mxu0 %v161
  %v189 = vpop.f32.mrf.mxu0
  %v190 = vadd.f32 %v142, %v189
  %191 = vmatmul.f32.gmra.mxu0 %v164
  %v192 = vpop.f32.mrf.mxu0
  %v193 = vadd.f32 %v147, %v192
  %194 = vmatmul.f32.gmra.mxu0 %v167
  %v195 = vpop.f32.mrf.mxu0
  %v196 = vadd.f32 %v152, %v195
  %197 = vmatmul.f32.gmra.mxu0 %v170
  %v198 = vpop.f32.mrf.mxu0
  %v199 = vadd.f32 %v157, %v198
  %200 = vdwg.mxu0
  %v201 = vtanh.pop %v190
  %v202 = vtanh.pop %v193
  %v203 = vtanh.pop %v196
  %v204 = vtanh.pop %v199
  %206 = vset.pattern.permute.xlu0 0
  %207 = vperm.xlu0 %206, %v55
  %v208 = vpop.permute.xlu0 %207
  %211 = vset.pattern.permute.xlu0 0
  %212 = vperm.xlu0 %211, %v56
  %v213 = vpop.permute.xlu0 %212
  %216 = vset.pattern.permute.xlu0 0
  %217 = vperm.xlu0 %216, %v57
  %v218 = vpop.permute.xlu0 %217
  %221 = vset.pattern.permute.xlu0 0
  %222 = vperm.xlu0 %221, %v58
  %v223 = vpop.permute.xlu0 %222
  %v226 = vsel %vm159, %v46, 0
  %v229 = vsel %vm159, %v47, 0
  %v232 = vsel %vm159, %v48, 0
  %v235 = vsel %vm159, %v49, 0
  %237 = vmatpush.msra.mxu0 0.0
  %238 = vmatpush.msra.mxu0 0.0
  %239 = vmatpush.msra.mxu0 0.0
  %240 = vmatpush.msra.mxu0 0.0
  %241 = vmatpush.msra.mxu0 0.0
  %242 = vmatpush.msra.mxu0 0.0
  %243 = vmatpush.msra.mxu0 0.0
  %244 = vmatpush.msra.mxu0 0.0
  %245 = vmatpush.msra.mxu0 0.0
  %246 = vmatpush.msra.mxu0 0.0
  %247 = vmatpush.msra.mxu0 0.0
  %248 = vmatpush.msra.mxu0 0.0
  %249 = vmatpush.msra.mxu0 %v204
  %250 = vmatpush.msra.mxu0 %v203
  %251 = vmatpush.msra.mxu0 %v202
  %252 = vmatpush.msra.mxu0 %v201
  %253 = vmatmul.f32.gmra.mxu0 %v226
  %v254 = vpop.f32.mrf.mxu0
  %v255 = vadd.f32 %v208, %v254
  %256 = vmatmul.f32.gmra.mxu0 %v229
  %v257 = vpop.f32.mrf.mxu0
  %v258 = vadd.f32 %v213, %v257
  %259 = vmatmul.f32.gmra.mxu0 %v232
  %v260 = vpop.f32.mrf.mxu0
  %v261 = vadd.f32 %v218, %v260
  %262 = vmatmul.f32.gmra.mxu0 %v235
  %v263 = vpop.f32.mrf.mxu0
  %v264 = vadd.f32 %v223, %v263
  %265 = vdwg.mxu0
  %v266 = vtanh.pop %v255
  %v267 = vtanh.pop %v258
  %v268 = vtanh.pop %v261
  %v269 = vtanh.pop %v264
  %271 = vset.pattern.permute.xlu0 0
  %272 = vperm.xlu0 %271, %v36
  %v273 = vpop.permute.xlu0 %272
  %276 = vset.pattern.permute.xlu0 0
  %277 = vperm.xlu0 %276, %v37
  %v278 = vpop.permute.xlu0 %277
  %281 = vset.pattern.permute.xlu0 0
  %282 = vperm.xlu0 %281, %v38
  %v283 = vpop.permute.xlu0 %282
  %286 = vset.pattern.permute.xlu0 0
  %287 = vperm.xlu0 %286, %v39
  %v288 = vpop.permute.xlu0 %287
  %v290 = vmul.f32 %v273, %v266
  %v291 = vmul.f32 %v278, %v267
  %v292 = vmul.f32 %v283, %v268
  %v293 = vmul.f32 %v288, %v269
  %v294 = vadd.f32 %v290, %v291
  %v295 = vadd.f32 %v294, %v292
  %v296 = vadd.f32 %v295, %v293
  %v297 = vrot.slane %v296, 4
  %v298 = vadd.f32 %v296, %v297
  %v299 = vrot.slane %v298, 2
  %v300 = vadd.f32 %v298, %v299
  %v301 = vrot.slane %v300, 1
  %v302 = vadd.f32 %v300, %v301
  %304 = vset.pattern.permute.xlu0 0
  %305 = vperm.xlu0 %304, %v40
  %v306 = vpop.permute.xlu0 %305
  %v308 = vperm.slane %v306, 0
  %v309 = vadd.f32 %v302, %v308
  %310 = vst [vmem:[%s7] sm:$0x1] %v309
  // Predicated region
  $region30: #{mlp_forward.1} parent=0 // pred_check
    _
  $region31: #{mlp_forward.1} parent=0 // pred_check_branch
    %312 = sbr.rel (0) target = $region33
  $region32: #{mlp_forward.1} parent=0 // pred_region
    _
  $region33: #{mlp_forward.1} parent=0 // pred_fallthru
    _
  // Predicated region
  $region34: #{mlp_forward.1} parent=0 // pred_check
    _
  $region35: #{mlp_forward.1} parent=0 // pred_check_branch
    %314 = sbr.rel (0) target = $region37
  $region36: #{mlp_forward.1} parent=0 // pred_region
    _
  $region37: #{mlp_forward.1} parent=0 // pred_fallthru
    _

</llo_original>
